<compile_context>
chip_gen: v7x
topology: tpu7x:2x2x1
jax: 0.10.0
libtpu: 0.0.40
codegen_flags: <defaults>
</compile_context>

<pallas_src>
import math
import functools

import numpy as np
import jax
import jax.numpy as jnp
from jax.experimental import pallas as pl
from jax.experimental.pallas import tpu as pltpu


# ----------------------------------------------------------------------------
# helpers
# ----------------------------------------------------------------------------
def _pick(n, target, quanta=(128, 16, 8, 1)):
    """Largest divisor of n that is <= target and a multiple of the coarsest
    possible quantum (tries 128 first for lane-dense tiles)."""
    if n <= target:
        return n
    for q in quanta:
        t = (target // q) * q
        while t >= q:
            if n % t == 0:
                return t
            t -= q
    return n


def _vmem_cap_bytes():
    """Per-core VMEM capacity with headroom for Mosaic internal scratch."""
    try:
        cap = pltpu.get_tpu_info().vmem_capacity_bytes
    except Exception:
        cap = 64 * 1024 * 1024            # conservative default (v7x per-core)
    return int(cap * 0.85)


def _compiler_params(semantics, need_bytes):
    kwargs = dict(dimension_semantics=semantics)
    if need_bytes > 28 * 1024 * 1024:
        cap = _vmem_cap_bytes()
        kwargs["vmem_limit_bytes"] = int(
            min(cap, max(32 * 1024 * 1024, int(1.25 * need_bytes))))
    return pltpu.CompilerParams(**kwargs)


def _invariant_spec(single_buffer, block_shape, index_map):
    """BlockSpec for a grid-invariant (weight) operand.

    single_buffer=True keeps it in one VMEM buffer (pl.Buffered(1)) instead of
    the default double buffer: a constant-index block is only DMA'd once, so
    this halves its footprint (critical for w_qkv / w_o at Qwen-7B sizes)."""
    if single_buffer:
        return pl.BlockSpec(block_shape, index_map, pipeline_mode=pl.Buffered(1))
    return pl.BlockSpec(block_shape, index_map)


# ----------------------------------------------------------------------------
# one-time weight packing (hoisted out of the per-call path)
# ----------------------------------------------------------------------------
def prepare_block_params(params, *, num_heads, compute_dtype=jnp.bfloat16):
    """Fold 1/sqrt(head_dim) into wq/bq, fuse wq|wk|wv, cast matmul weights."""
    cdt = jnp.dtype(compute_dtype)
    D = params["wq"].shape[0]
    head_dim = D // num_heads
    scale = 1.0 / math.sqrt(head_dim)
    w_qkv = jnp.concatenate(
        [params["wq"] * scale, params["wk"], params["wv"]], axis=1).astype(cdt)
    b_qkv = jnp.concatenate(
        [params["bq"] * scale, params["bk"], params["bv"]], axis=1).astype(jnp.float32)
    return {
        "w_qkv": w_qkv,
        "b_qkv": b_qkv,
        "ln1": params["ln1"].astype(jnp.float32),
        "ln2": params["ln2"].astype(jnp.float32),
        "wo": params["wo"].astype(cdt),
        "w_up": params["w_up"].astype(cdt),
        "w_gate": params["w_gate"].astype(cdt),
        "w_down": params["w_down"].astype(cdt),
    }


# ----------------------------------------------------------------------------
# kernel A: RMSNorm1 + fused QKV projection (attention scale folded into wq/bq)
# ----------------------------------------------------------------------------
def _qkv_kernel(eps, num_heads, head_dim,
                x_ref, ln1_ref, wqkv_ref, bqkv_ref, q_ref, k_ref, v_ref):
    x = x_ref[...].astype(jnp.float32)                         # (TS, D)
    var = jnp.mean(x * x, axis=-1, keepdims=True)
    h = (x * jax.lax.rsqrt(var + eps)) * ln1_ref[...]          # f32 RMSNorm
    h = h.astype(wqkv_ref.dtype)
    qkv = jnp.dot(h, wqkv_ref[...], preferred_element_type=jnp.float32)
    qkv = qkv + bqkv_ref[...]                                  # f32 bias add
    D = num_heads * head_dim
    KVD = k_ref.shape[-1]
    # q is written head-major (num_heads, tokens, head_dim) so kernel B can
    # batch a KV group's n_rep query heads into one MXU matmul for free.
    for hh in range(num_heads):
        q_ref[hh] = qkv[:, hh * head_dim:(hh + 1) * head_dim].astype(q_ref.dtype)
    k_ref[...] = qkv[:, D:D + KVD].astype(k_ref.dtype)
    v_ref[...] = qkv[:, D + KVD:].astype(v_ref.dtype)


# ----------------------------------------------------------------------------
# kernel B: flash-style causal GQA + o_proj + first residual
# ----------------------------------------------------------------------------
def _attn_kernel(num_heads, num_kv_heads, head_dim, tq, tk, approx_recip,
                 qi_map, ki_map, x_ref, q_ref, k_ref, v_ref, wo_ref, out_ref,
                 acc_scr, m_scr, l_scr, o_scr):
    n_rep = num_heads // num_kv_heads
    R = n_rep * tq
    s_idx = pl.program_id(1)
    qi = qi_map[s_idx]
    ki = ki_map[s_idx]
    # last KV tile contributing to this query tile (tk is a multiple of tq)
    last_ki = ((qi + 1) * tq - 1) // tk
    # this KV tile intersects the causal diagonal -> needs masking
    needs_mask = (ki + 1) * tk - 1 > qi * tq

    @pl.when(ki == 0)
    def _init():
        acc_scr[...] = jnp.zeros(acc_scr.shape, acc_scr.dtype)
        m_scr[...] = jnp.full(m_scr.shape, -jnp.inf, m_scr.dtype)
        l_scr[...] = jnp.zeros(l_scr.shape, l_scr.dtype)

    def _update(masked):
        p_dtype = v_ref.dtype            # bf16 exp on the bf16 path, f32 on f32 path
        if masked:
            row = qi * tq + jax.lax.broadcasted_iota(
                jnp.int32, (n_rep, tq, tk), 1).reshape(R, tk)
            col = ki * tk + jax.lax.broadcasted_iota(jnp.int32, (R, tk), 1)
            mask = row >= col
        for g in range(num_kv_heads):
            rs = slice(g * R, (g + 1) * R)
            hs = slice(g * head_dim, (g + 1) * head_dim)
            # stack the group's n_rep query heads along rows: one big MXU matmul
            qg = q_ref[g * n_rep:(g + 1) * n_rep].reshape(R, head_dim)
            kg = k_ref[:, hs]                                  # (TK, hd)
            vg = v_ref[:, hs]
            s = jax.lax.dot_general(qg, kg, (((1,), (1,)), ((), ())),
                                    preferred_element_type=jnp.float32)
            if masked:
                s = jnp.where(mask, s, -1e30)
            m_prev = m_scr[rs]                                 # (R, 1)
            m_new = jnp.maximum(m_prev, jnp.max(s, axis=-1, keepdims=True))
            alpha = jnp.exp(m_prev - m_new)                    # f32, (R,1)
            p = jnp.exp((s - m_new).astype(p_dtype))           # EUP in compute dtype
            l_scr[rs] = alpha * l_scr[rs] + jnp.sum(
                p.astype(jnp.float32), axis=-1, keepdims=True)
            m_scr[rs] = m_new
            acc_scr[rs] = alpha * acc_scr[rs] + jnp.dot(
                p, vg, preferred_element_type=jnp.float32)

    @pl.when(needs_mask)
    def _masked():
        _update(True)

    @pl.when(jnp.logical_not(needs_mask))
    def _unmasked():
        _update(False)

    @pl.when(ki == last_ki)
    def _finalize():
        for h in range(num_heads):
            rs = slice(h * tq, (h + 1) * tq)
            cs = slice(h * head_dim, (h + 1) * head_dim)
            o_scr[:, cs] = (acc_scr[rs] *
                            pl.reciprocal(l_scr[rs], approx=approx_recip)
                            ).astype(o_scr.dtype)
        attn = jnp.dot(o_scr[...], wo_ref[...], preferred_element_type=jnp.float32)
        out_ref[...] = (x_ref[...].astype(jnp.float32) + attn).astype(out_ref.dtype)


# ----------------------------------------------------------------------------
# kernel C: RMSNorm2 + gated MLP (I-tiled reduction) + second residual
# ----------------------------------------------------------------------------
def _mlp_kernel(eps, x1_ref, ln2_ref, wu_ref, wg_ref, wd_ref, out_ref,
                h2_scr, acc_scr):
    ii = pl.program_id(1)

    @pl.when(ii == 0)
    def _init():
        x1 = x1_ref[...].astype(jnp.float32)
        var = jnp.mean(x1 * x1, axis=-1, keepdims=True)
        h2 = (x1 * jax.lax.rsqrt(var + eps)) * ln2_ref[...]
        h2_scr[...] = h2.astype(h2_scr.dtype)                  # reused for all I-tiles
        acc_scr[...] = jnp.zeros(acc_scr.shape, acc_scr.dtype)

    h2 = h2_scr[...]
    up = jnp.dot(h2, wu_ref[...], preferred_element_type=jnp.float32)
    gate = jnp.dot(h2, wg_ref[...], preferred_element_type=jnp.float32)
    act = (jax.nn.silu(gate) * up).astype(wd_ref.dtype)
    acc_scr[...] += jnp.dot(act, wd_ref[...], preferred_element_type=jnp.float32)

    @pl.when(ii == pl.num_programs(1) - 1)
    def _finalize():
        out_ref[...] = (x1_ref[...].astype(jnp.float32)
                        + acc_scr[...]).astype(out_ref.dtype)


# ----------------------------------------------------------------------------
# wrapper
# ----------------------------------------------------------------------------
def block_forward(x, packed, *, num_heads, num_kv_heads, eps=1e-6,
                  proj_token_tile=256, attn_q_tile=128, attn_kv_tile=256,
                  mlp_token_tile=512, i_tile=512):
    B, T, D = x.shape
    assert D % num_heads == 0 and num_heads % num_kv_heads == 0
    head_dim = D // num_heads
    kv_dim = num_kv_heads * head_dim
    I = packed["w_up"].shape[1]
    cdt = packed["w_qkv"].dtype
    xds = x.dtype.itemsize
    cds = cdt.itemsize
    qkv_cols = D + 2 * kv_dim
    NTOK = B * T
    approx_recip = bool(cdt != jnp.float32)   # exact recip on the f32 parity path

    x2d = x.reshape(NTOK, D)

    # ---------------- kernel A: RMSNorm1 + fused QKV ----------------
    TSA = _pick(NTOK, proj_token_tile)
    NTA = NTOK // TSA
    flops_a = 2 * NTOK * D * qkv_cols
    bytes_a = NTOK * D * xds + NTOK * qkv_cols * cds + D * qkv_cols * cds
    need_a = (2 * D * qkv_cols * cds + 2 * TSA * D * xds
              + 4 * TSA * qkv_cols * cds + 1024)

    def _run_qkv(single_buf):
        return pl.pallas_call(
            functools.partial(_qkv_kernel, eps, num_heads, head_dim),
            out_shape=(jax.ShapeDtypeStruct((num_heads, NTOK, head_dim), cdt),
                       jax.ShapeDtypeStruct((NTOK, kv_dim), cdt),
                       jax.ShapeDtypeStruct((NTOK, kv_dim), cdt)),
            grid=(NTA,),
            in_specs=[
                pl.BlockSpec((TSA, D), lambda t: (t, 0)),
                pl.BlockSpec((1, D), lambda t: (0, 0)),
                _invariant_spec(single_buf, (D, qkv_cols), lambda t: (0, 0)),
                pl.BlockSpec((1, qkv_cols), lambda t: (0, 0)),
            ],
            out_specs=(
                pl.BlockSpec((num_heads, TSA, head_dim), lambda t: (0, t, 0)),
                pl.BlockSpec((TSA, kv_dim), lambda t: (t, 0)),
                pl.BlockSpec((TSA, kv_dim), lambda t: (t, 0)),
            ),
            compiler_params=_compiler_params(("parallel",), need_a),
            cost_estimate=pl.CostEstimate(flops=int(flops_a),
                                          transcendentals=int(NTOK),
                                          bytes_accessed=int(bytes_a)),
        )(x2d, packed["ln1"], packed["w_qkv"], packed["b_qkv"])

    try:
        q_arr, k_arr, v_arr = _run_qkv(True)
    except Exception:
        q_arr, k_arr, v_arr = _run_qkv(False)

    # -------- kernel B: flash causal GQA + o_proj + residual --------
    TQ = _pick(T, attn_q_tile)
    NQ = T // TQ
    mult = max(1, min(attn_kv_tile // TQ, NQ))
    while NQ % mult != 0:
        mult -= 1
    TK = mult * TQ                       # TK is a multiple of TQ and divides T
    NK = T // TK

    qi_list, ki_list = [], []
    for qi in range(NQ):                 # only lower-triangular (qi, ki) pairs
        for ki in range(((qi + 1) * TQ - 1) // TK + 1):
            qi_list.append(qi)
            ki_list.append(ki)
    n_steps = len(qi_list)
    qi_map = jnp.asarray(qi_list, jnp.int32)
    ki_map = jnp.asarray(ki_list, jnp.int32)

    flops_b = B * (n_steps * 4 * num_heads * TQ * TK * head_dim
                   + NQ * 2 * TQ * D * D)
    bytes_b = (2 * NTOK * D * xds + NTOK * D * cds
               + B * n_steps * 2 * TK * kv_dim * cds + D * D * cds)
    need_b = (2 * D * D * cds + 4 * TQ * D * xds
              + 2 * num_heads * TQ * head_dim * cds + 4 * TK * kv_dim * cds
              + num_heads * TQ * head_dim * 4 + 2 * num_heads * TQ * 128 * 4
              + TQ * D * cds + 1024)

    def _run_attn(single_buf):
        return pl.pallas_call(
            functools.partial(_attn_kernel, num_heads, num_kv_heads, head_dim,
                              TQ, TK, approx_recip),
            out_shape=jax.ShapeDtypeStruct((NTOK, D), x.dtype),
            grid_spec=pltpu.PrefetchScalarGridSpec(
                num_scalar_prefetch=2,
                grid=(B, n_steps),
                in_specs=[
                    pl.BlockSpec((TQ, D),
                                 lambda b, s, qm, km: (b * NQ + qm[s], 0)),      # x
                    pl.BlockSpec((num_heads, TQ, head_dim),
                                 lambda b, s, qm, km: (0, b * NQ + qm[s], 0)),   # q
                    pl.BlockSpec((TK, kv_dim),
                                 lambda b, s, qm, km: (b * NK + km[s], 0)),      # k
                    pl.BlockSpec((TK, kv_dim),
                                 lambda b, s, qm, km: (b * NK + km[s], 0)),      # v
                    _invariant_spec(single_buf, (D, D),
                                    lambda b, s, qm, km: (0, 0)),                # wo
                ],
                out_specs=pl.BlockSpec((TQ, D),
                                       lambda b, s, qm, km: (b * NQ + qm[s], 0)),
                scratch_shapes=[
                    pltpu.VMEM((num_heads * TQ, head_dim), jnp.float32),  # acc
                    pltpu.VMEM((num_heads * TQ, 1), jnp.float32),         # running max
                    pltpu.VMEM((num_heads * TQ, 1), jnp.float32),         # running sum
                    pltpu.VMEM((TQ, D), cdt),                             # o (head-concat)
                ],
            ),
            compiler_params=_compiler_params(("parallel", "arbitrary"), need_b),
            cost_estimate=pl.CostEstimate(
                flops=int(flops_b),
                transcendentals=int(B * n_steps * num_heads * TQ * TK),
                bytes_accessed=int(bytes_b)),
        )(qi_map, ki_map, x2d, q_arr, k_arr, v_arr, packed["wo"])

    try:
        x1 = _run_attn(True)
    except Exception:
        x1 = _run_attn(False)

    # -------- kernel C: RMSNorm2 + gated MLP (I-tiled) + residual --------
    TSM = _pick(NTOK, mlp_token_tile)
    NTM = NTOK // TSM
    TI = _pick(I, i_tile)
    NI = I // TI
    flops_c = 6 * NTOK * D * I
    bytes_c = 2 * NTOK * D * xds + NTM * 3 * D * I * cds
    need_c = (4 * TSM * D * xds + 6 * D * TI * cds + TSM * D * cds
              + 4 * TSM * D + 1024)

    out2d = pl.pallas_call(
        functools.partial(_mlp_kernel, eps),
        out_shape=jax.ShapeDtypeStruct((NTOK, D), x.dtype),
        grid=(NTM, NI),
        in_specs=[
            pl.BlockSpec((TSM, D), lambda t, i: (t, 0)),
            pl.BlockSpec((1, D), lambda t, i: (0, 0)),
            pl.BlockSpec((D, TI), lambda t, i: (0, i)),
            pl.BlockSpec((D, TI), lambda t, i: (0, i)),
            pl.BlockSpec((TI, D), lambda t, i: (i, 0)),
        ],
        out_specs=pl.BlockSpec((TSM, D), lambda t, i: (t, 0)),
        scratch_shapes=[pltpu.VMEM((TSM, D), cdt),          # RMSNorm2 activations
                        pltpu.VMEM((TSM, D), jnp.float32)], # down-proj accumulator
        compiler_params=_compiler_params(("parallel", "arbitrary"), need_c),
        cost_estimate=pl.CostEstimate(flops=int(flops_c),
                                      transcendentals=int(NTOK * I + NTOK),
                                      bytes_accessed=int(bytes_c)),
    )(x1, packed["ln2"], packed["w_up"], packed["w_gate"], packed["w_down"])

    return out2d.reshape(B, T, D)


# ---------------- pure-JAX reference (mirrors the PyTorch module) ----------------
def reference_block(x, p, *, num_heads, num_kv_heads, eps=1e-6):
    B, T, D = x.shape
    head_dim = D // num_heads
    n_rep = num_heads // num_kv_heads

    def rmsnorm(h, w):
        hf = h.astype(jnp.float32)
        var = jnp.mean(hf * hf, axis=-1, keepdims=True)
        return (hf * jax.lax.rsqrt(var + eps)) * w[0]

    h = rmsnorm(x, p["ln1"])
    q = h @ p["wq"] + p["bq"][0]
    k = h @ p["wk"] + p["bk"][0]
    v = h @ p["wv"] + p["bv"][0]
    q = q.reshape(B, T, num_heads, head_dim).transpose(0, 2, 1, 3)
    k = k.reshape(B, T, num_kv_heads, head_dim).transpose(0, 2, 1, 3)
    v = v.reshape(B, T, num_kv_heads, head_dim).transpose(0, 2, 1, 3)
    k = jnp.repeat(k, n_rep, axis=1)
    v = jnp.repeat(v, n_rep, axis=1)
    attn = jnp.einsum("bhqd,bhkd->bhqk", q, k) / math.sqrt(head_dim)
    mask = jnp.tril(jnp.ones((T, T), dtype=bool))
    attn = jnp.where(mask[None, None], attn, -jnp.inf)
    attn = jax.nn.softmax(attn, axis=-1)
    o = jnp.einsum("bhqk,bhkd->bhqd", attn, v)
    o = o.transpose(0, 2, 1, 3).reshape(B, T, D)
    o = o @ p["wo"]
    x1 = x + o
    h2 = rmsnorm(x1, p["ln2"])
    up = h2 @ p["w_up"]
    gate = h2 @ p["w_gate"]
    mlp = (jax.nn.silu(gate) * up) @ p["w_down"]
    return x1 + mlp


if __name__ == "__main__":
    # small shapes consistent with the module
    B, T, D = 2, 8, 32
    num_heads, num_kv_heads = 4, 2
    head_dim = D // num_heads
    kv_dim = num_kv_heads * head_dim
    I = 64  # immediate_dim

    key = jax.random.PRNGKey(0)
    keys = jax.random.split(key, 12)
    s = 0.05

    params = {
        "ln1":    jnp.ones((1, D), jnp.float32),
        "ln2":    jnp.ones((1, D), jnp.float32),
        "wq":     s * jax.random.normal(keys[0], (D, D), jnp.float32),
        "bq":     s * jax.random.normal(keys[1], (1, D), jnp.float32),
        "wk":     s * jax.random.normal(keys[2], (D, kv_dim), jnp.float32),
        "bk":     s * jax.random.normal(keys[3], (1, kv_dim), jnp.float32),
        "wv":     s * jax.random.normal(keys[4], (D, kv_dim), jnp.float32),
        "bv":     s * jax.random.normal(keys[5], (1, kv_dim), jnp.float32),
        "wo":     s * jax.random.normal(keys[6], (D, D), jnp.float32),
        "w_up":   s * jax.random.normal(keys[7], (D, I), jnp.float32),
        "w_gate": s * jax.random.normal(keys[8], (D, I), jnp.float32),
        "w_down": s * jax.random.normal(keys[9], (I, D), jnp.float32),
    }

    x = jax.random.normal(keys[10], (B, T, D), jnp.float32)

    ref = jax.block_until_ready(
        reference_block(x, params, num_heads=num_heads, num_kv_heads=num_kv_heads))

    # f32 compute path: algorithm-exact parity check (exact softmax reciprocal).
    packed_f32 = prepare_block_params(params, num_heads=num_heads,
                                      compute_dtype=jnp.float32)
    out_f32 = block_forward(x, packed_f32, num_heads=num_heads,
                            num_kv_heads=num_kv_heads)
    out_f32 = jax.block_until_ready(out_f32)
    assert out_f32.shape == (B, T, D) and out_f32.dtype == x.dtype
    np.testing.assert_allclose(np.asarray(out_f32), np.asarray(ref),
                               rtol=5e-3, atol=5e-3)

    # bf16 compute path (production config): bf16 operands / exp, f32 accumulation.
    packed_bf16 = prepare_block_params(params, num_heads=num_heads,
                                       compute_dtype=jnp.bfloat16)
    out_bf16 = block_forward(x, packed_bf16, num_heads=num_heads,
                             num_kv_heads=num_kv_heads)
    out_bf16 = jax.block_until_ready(out_bf16)
    assert out_bf16.shape == (B, T, D) and out_bf16.dtype == x.dtype
    np.testing.assert_allclose(np.asarray(out_bf16), np.asarray(ref),
                               rtol=3e-2, atol=3e-2)

    print("KERNEL_OK")
</pallas_src>

<mosaic_0001>
module attributes {stable_mosaic.version = 11 : i64} {
  func.func @_qkv_kernel(%arg0: i32, %arg1: memref<16x32xf32, #tpu.memory_space<vmem>>, %arg2: memref<1x32xf32, #tpu.memory_space<vmem>>, %arg3: memref<32x64xf32, #tpu.memory_space<vmem>>, %arg4: memref<1x64xf32, #tpu.memory_space<vmem>>, %arg5: memref<4x16x8xf32, #tpu.memory_space<vmem>>, %arg6: memref<16x16xf32, #tpu.memory_space<vmem>>, %arg7: memref<16x16xf32, #tpu.memory_space<vmem>>) attributes {dimension_semantics = [#tpu.dimension_semantics<parallel>], iteration_bounds = array<i64: 1>, scalar_prefetch = 0 : i64, scratch_operands = 0 : i64, tpu.core_type = #tpu.core_type<tc>, window_params = [{transform_indices = @transform_0, window_bounds = array<i64: 16, 32>}, {pipeline_mode = #tpu.pipeline_mode<synchronous>, transform_indices = @transform_1, window_bounds = array<i64: 1, 32>}, {pipeline_mode = #tpu.pipeline_mode<synchronous>, transform_indices = @transform_2, window_bounds = array<i64: 32, 64>}, {pipeline_mode = #tpu.pipeline_mode<synchronous>, transform_indices = @transform_3, window_bounds = array<i64: 1, 64>}, {transform_indices = @transform_4, window_bounds = array<i64: 4, 16, 8>}, {transform_indices = @transform_5, window_bounds = array<i64: 16, 16>}, {transform_indices = @transform_6, window_bounds = array<i64: 16, 16>}]} {
    %c0 = arith.constant 0 : index
    %c0_0 = arith.constant 0 : index
    %0 = vector.load %arg1[%c0, %c0_0] : memref<16x32xf32, #tpu.memory_space<vmem>>, vector<16x32xf32>
    %1 = arith.mulf %0, %0 : vector<16x32xf32>
    %cst = arith.constant dense<0.000000e+00> : vector<16xf32>
    %2 = vector.multi_reduction <add>, %1, %cst [1] : vector<16x32xf32> to vector<16xf32>
    %3 = vector.shape_cast %2 : vector<16xf32> to vector<16x1xf32>
    %cst_1 = arith.constant 3.200000e+01 : f32
    %4 = vector.broadcast %cst_1 : f32 to vector<16x1xf32>
    %5 = arith.divf %3, %4 : vector<16x1xf32>
    %cst_2 = arith.constant 9.99999997E-7 : f32
    %6 = vector.broadcast %cst_2 : f32 to vector<16x1xf32>
    %7 = arith.addf %5, %6 : vector<16x1xf32>
    %8 = math.rsqrt %7 : vector<16x1xf32>
    %9 = vector.broadcast %8 : vector<16x1xf32> to vector<16x32xf32>
    %10 = arith.mulf %0, %9 : vector<16x32xf32>
    %c0_3 = arith.constant 0 : index
    %c0_4 = arith.constant 0 : index
    %11 = vector.load %arg2[%c0_3, %c0_4] : memref<1x32xf32, #tpu.memory_space<vmem>>, vector<1x32xf32>
    %12 = vector.broadcast %11 : vector<1x32xf32> to vector<16x32xf32>
    %13 = arith.mulf %10, %12 : vector<16x32xf32>
    %c0_5 = arith.constant 0 : index
    %c0_6 = arith.constant 0 : index
    %14 = vector.load %arg3[%c0_5, %c0_6] : memref<32x64xf32, #tpu.memory_space<vmem>>, vector<32x64xf32>
    %cst_7 = arith.constant dense<0.000000e+00> : vector<16x64xf32>
    %15 = tpu.matmul %13, %14, %cst_7 {dimension_numbers = #tpu.dot_dimension_numbers<[1], [0], [0], [1], [0, 0, 1, 1], [], []>} : vector<16x32xf32>, vector<32x64xf32>, vector<16x64xf32> -> vector<16x64xf32>
    %c0_8 = arith.constant 0 : index
    %c0_9 = arith.constant 0 : index
    %16 = vector.load %arg4[%c0_8, %c0_9] : memref<1x64xf32, #tpu.memory_space<vmem>>, vector<1x64xf32>
    %17 = vector.broadcast %16 : vector<1x64xf32> to vector<16x64xf32>
    %18 = arith.addf %15, %17 : vector<16x64xf32>
    %19 = vector.extract_strided_slice %18 {offsets = [0, 0], sizes = [16, 8], strides = [1, 1]} : vector<16x64xf32> to vector<16x8xf32>
    %c0_10 = arith.constant 0 : index
    %c0_11 = arith.constant 0 : index
    %c0_12 = arith.constant 0 : index
    %20 = vector.load %arg5[%c0_10, %c0_11, %c0_12] : memref<4x16x8xf32, #tpu.memory_space<vmem>>, vector<1x16x8xf32>
    %21 = vector.shape_cast %20 : vector<1x16x8xf32> to vector<16x8xf32>
    %22 = vector.shape_cast %19 : vector<16x8xf32> to vector<1x16x8xf32>
    tpu.vector_store %arg5[%c0_10, %c0_11, %c0_12], %22 {strides = array<i32>} : memref<4x16x8xf32, #tpu.memory_space<vmem>>, vector<1x16x8xf32>,
    %23 = vector.extract_strided_slice %18 {offsets = [0, 8], sizes = [16, 8], strides = [1, 1]} : vector<16x64xf32> to vector<16x8xf32>
    %c1 = arith.constant 1 : index
    %c0_13 = arith.constant 0 : index
    %c0_14 = arith.constant 0 : index
    %24 = vector.load %arg5[%c1, %c0_13, %c0_14] : memref<4x16x8xf32, #tpu.memory_space<vmem>>, vector<1x16x8xf32>
    %25 = vector.shape_cast %24 : vector<1x16x8xf32> to vector<16x8xf32>
    %26 = vector.shape_cast %23 : vector<16x8xf32> to vector<1x16x8xf32>
    tpu.vector_store %arg5[%c1, %c0_13, %c0_14], %26 {strides = array<i32>} : memref<4x16x8xf32, #tpu.memory_space<vmem>>, vector<1x16x8xf32>,
    %27 = vector.extract_strided_slice %18 {offsets = [0, 16], sizes = [16, 8], strides = [1, 1]} : vector<16x64xf32> to vector<16x8xf32>
    %c2 = arith.constant 2 : index
    %c0_15 = arith.constant 0 : index
    %c0_16 = arith.constant 0 : index
    %28 = vector.load %arg5[%c2, %c0_15, %c0_16] : memref<4x16x8xf32, #tpu.memory_space<vmem>>, vector<1x16x8xf32>
    %29 = vector.shape_cast %28 : vector<1x16x8xf32> to vector<16x8xf32>
    %30 = vector.shape_cast %27 : vector<16x8xf32> to vector<1x16x8xf32>
    tpu.vector_store %arg5[%c2, %c0_15, %c0_16], %30 {strides = array<i32>} : memref<4x16x8xf32, #tpu.memory_space<vmem>>, vector<1x16x8xf32>,
    %31 = vector.extract_strided_slice %18 {offsets = [0, 24], sizes = [16, 8], strides = [1, 1]} : vector<16x64xf32> to vector<16x8xf32>
    %c3 = arith.constant 3 : index
    %c0_17 = arith.constant 0 : index
    %c0_18 = arith.constant 0 : index
    %32 = vector.load %arg5[%c3, %c0_17, %c0_18] : memref<4x16x8xf32, #tpu.memory_space<vmem>>, vector<1x16x8xf32>
    %33 = vector.shape_cast %32 : vector<1x16x8xf32> to vector<16x8xf32>
    %34 = vector.shape_cast %31 : vector<16x8xf32> to vector<1x16x8xf32>
    tpu.vector_store %arg5[%c3, %c0_17, %c0_18], %34 {strides = array<i32>} : memref<4x16x8xf32, #tpu.memory_space<vmem>>, vector<1x16x8xf32>,
    %35 = vector.extract_strided_slice %18 {offsets = [0, 32], sizes = [16, 16], strides = [1, 1]} : vector<16x64xf32> to vector<16x16xf32>
    %c0_19 = arith.constant 0 : index
    %c0_20 = arith.constant 0 : index
    %36 = vector.load %arg6[%c0_19, %c0_20] : memref<16x16xf32, #tpu.memory_space<vmem>>, vector<16x16xf32>
    tpu.vector_store %arg6[%c0_19, %c0_20], %35 {strides = array<i32>} : memref<16x16xf32, #tpu.memory_space<vmem>>, vector<16x16xf32>,
    %37 = vector.extract_strided_slice %18 {offsets = [0, 48], sizes = [16, 16], strides = [1, 1]} : vector<16x64xf32> to vector<16x16xf32>
    %c0_21 = arith.constant 0 : index
    %c0_22 = arith.constant 0 : index
    %38 = vector.load %arg7[%c0_21, %c0_22] : memref<16x16xf32, #tpu.memory_space<vmem>>, vector<16x16xf32>
    tpu.vector_store %arg7[%c0_21, %c0_22], %37 {strides = array<i32>} : memref<16x16xf32, #tpu.memory_space<vmem>>, vector<16x16xf32>,
    return
  }
  func.func @transform_0(%arg0: i32) -> (i32, i32) {
    %c0_i32 = arith.constant 0 : i32
    %c0_i32_0 = arith.constant 0 : i32
    return %arg0, %c0_i32 : i32, i32
  }
  func.func @transform_1(%arg0: i32) -> (i32, i32) {
    %c0_i32 = arith.constant 0 : i32
    %c0_i32_0 = arith.constant 0 : i32
    %c0_i32_1 = arith.constant 0 : i32
    return %c0_i32, %c0_i32_0 : i32, i32
  }
  func.func @transform_2(%arg0: i32) -> (i32, i32) {
    %c0_i32 = arith.constant 0 : i32
    %c0_i32_0 = arith.constant 0 : i32
    %c0_i32_1 = arith.constant 0 : i32
    return %c0_i32, %c0_i32_0 : i32, i32
  }
  func.func @transform_3(%arg0: i32) -> (i32, i32) {
    %c0_i32 = arith.constant 0 : i32
    %c0_i32_0 = arith.constant 0 : i32
    %c0_i32_1 = arith.constant 0 : i32
    return %c0_i32, %c0_i32_0 : i32, i32
  }
  func.func @transform_4(%arg0: i32) -> (i32, i32, i32) {
    %c0_i32 = arith.constant 0 : i32
    %c0_i32_0 = arith.constant 0 : i32
    %c0_i32_1 = arith.constant 0 : i32
    return %c0_i32, %arg0, %c0_i32_0 : i32, i32, i32
  }
  func.func @transform_5(%arg0: i32) -> (i32, i32) {
    %c0_i32 = arith.constant 0 : i32
    %c0_i32_0 = arith.constant 0 : i32
    return %arg0, %c0_i32 : i32, i32
  }
  func.func @transform_6(%arg0: i32) -> (i32, i32) {
    %c0_i32 = arith.constant 0 : i32
    %c0_i32_0 = arith.constant 0 : i32
    return %arg0, %c0_i32 : i32, i32
  }
}

module attributes {stable_mosaic.version = 11 : i64} {
  func.func @_qkv_kernel(%arg0: i32, %arg1: memref<16x32xf32, #tpu.memory_space<vmem>>, %arg2: memref<1x32xf32, #tpu.memory_space<vmem>>, %arg3: memref<32x64xf32, #tpu.memory_space<vmem>>, %arg4: memref<1x64xf32, #tpu.memory_space<vmem>>, %arg5: memref<4x16x8xf32, #tpu.memory_space<vmem>>, %arg6: memref<16x16xf32, #tpu.memory_space<vmem>>, %arg7: memref<16x16xf32, #tpu.memory_space<vmem>>) attributes {dimension_semantics = [#tpu.dimension_semantics<parallel>], iteration_bounds = array<i64: 1>, scalar_prefetch = 0 : i64, scratch_operands = 0 : i64, tpu.core_type = #tpu.core_type<tc>, window_params = [{transform_indices = @transform_0, window_bounds = array<i64: 16, 32>}, {pipeline_mode = #tpu.pipeline_mode<synchronous>, transform_indices = @transform_1, window_bounds = array<i64: 1, 32>}, {pipeline_mode = #tpu.pipeline_mode<synchronous>, transform_indices = @transform_2, window_bounds = array<i64: 32, 64>}, {pipeline_mode = #tpu.pipeline_mode<synchronous>, transform_indices = @transform_3, window_bounds = array<i64: 1, 64>}, {transform_indices = @transform_4, window_bounds = array<i64: 4, 16, 8>}, {transform_indices = @transform_5, window_bounds = array<i64: 16, 16>}, {transform_indices = @transform_6, window_bounds = array<i64: 16, 16>}]} {
    %c0 = arith.constant 0 : index
    %c0_0 = arith.constant 0 : index
    %0 = vector.load %arg1[%c0, %c0_0] : memref<16x32xf32, #tpu.memory_space<vmem>>, vector<16x32xf32>
    %1 = arith.mulf %0, %0 : vector<16x32xf32>
    %cst = arith.constant dense<0.000000e+00> : vector<16xf32>
    %2 = vector.multi_reduction <add>, %1, %cst [1] : vector<16x32xf32> to vector<16xf32>
    %3 = vector.shape_cast %2 : vector<16xf32> to vector<16x1xf32>
    %cst_1 = arith.constant 3.200000e+01 : f32
    %4 = vector.broadcast %cst_1 : f32 to vector<16x1xf32>
    %5 = arith.divf %3, %4 : vector<16x1xf32>
    %cst_2 = arith.constant 9.99999997E-7 : f32
    %6 = vector.broadcast %cst_2 : f32 to vector<16x1xf32>
    %7 = arith.addf %5, %6 : vector<16x1xf32>
    %8 = math.rsqrt %7 : vector<16x1xf32>
    %9 = vector.broadcast %8 : vector<16x1xf32> to vector<16x32xf32>
    %10 = arith.mulf %0, %9 : vector<16x32xf32>
    %c0_3 = arith.constant 0 : index
    %c0_4 = arith.constant 0 : index
    %11 = vector.load %arg2[%c0_3, %c0_4] : memref<1x32xf32, #tpu.memory_space<vmem>>, vector<1x32xf32>
    %12 = vector.broadcast %11 : vector<1x32xf32> to vector<16x32xf32>
    %13 = arith.mulf %10, %12 : vector<16x32xf32>
    %c0_5 = arith.constant 0 : index
    %c0_6 = arith.constant 0 : index
    %14 = vector.load %arg3[%c0_5, %c0_6] : memref<32x64xf32, #tpu.memory_space<vmem>>, vector<32x64xf32>
    %cst_7 = arith.constant dense<0.000000e+00> : vector<16x64xf32>
    %15 = tpu.matmul %13, %14, %cst_7 {dimension_numbers = #tpu.dot_dimension_numbers<[1], [0], [0], [1], [0, 0, 1, 1], [], []>} : vector<16x32xf32>, vector<32x64xf32>, vector<16x64xf32> -> vector<16x64xf32>
    %c0_8 = arith.constant 0 : index
    %c0_9 = arith.constant 0 : index
    %16 = vector.load %arg4[%c0_8, %c0_9] : memref<1x64xf32, #tpu.memory_space<vmem>>, vector<1x64xf32>
    %17 = vector.broadcast %16 : vector<1x64xf32> to vector<16x64xf32>
    %18 = arith.addf %15, %17 : vector<16x64xf32>
    %19 = vector.extract_strided_slice %18 {offsets = [0, 0], sizes = [16, 8], strides = [1, 1]} : vector<16x64xf32> to vector<16x8xf32>
    %c0_10 = arith.constant 0 : index
    %c0_11 = arith.constant 0 : index
    %c0_12 = arith.constant 0 : index
    %20 = vector.load %arg5[%c0_10, %c0_11, %c0_12] : memref<4x16x8xf32, #tpu.memory_space<vmem>>, vector<1x16x8xf32>
    %21 = vector.shape_cast %20 : vector<1x16x8xf32> to vector<16x8xf32>
    %22 = vector.shape_cast %19 : vector<16x8xf32> to vector<1x16x8xf32>
    tpu.vector_store %arg5[%c0_10, %c0_11, %c0_12], %22 {strides = array<i32>} : memref<4x16x8xf32, #tpu.memory_space<vmem>>, vector<1x16x8xf32>,
    %23 = vector.extract_strided_slice %18 {offsets = [0, 8], sizes = [16, 8], strides = [1, 1]} : vector<16x64xf32> to vector<16x8xf32>
    %c1 = arith.constant 1 : index
    %c0_13 = arith.constant 0 : index
    %c0_14 = arith.constant 0 : index
    %24 = vector.load %arg5[%c1, %c0_13, %c0_14] : memref<4x16x8xf32, #tpu.memory_space<vmem>>, vector<1x16x8xf32>
    %25 = vector.shape_cast %24 : vector<1x16x8xf32> to vector<16x8xf32>
    %26 = vector.shape_cast %23 : vector<16x8xf32> to vector<1x16x8xf32>
    tpu.vector_store %arg5[%c1, %c0_13, %c0_14], %26 {strides = array<i32>} : memref<4x16x8xf32, #tpu.memory_space<vmem>>, vector<1x16x8xf32>,
    %27 = vector.extract_strided_slice %18 {offsets = [0, 16], sizes = [16, 8], strides = [1, 1]} : vector<16x64xf32> to vector<16x8xf32>
    %c2 = arith.constant 2 : index
    %c0_15 = arith.constant 0 : index
    %c0_16 = arith.constant 0 : index
    %28 = vector.load %arg5[%c2, %c0_15, %c0_16] : memref<4x16x8xf32, #tpu.memory_space<vmem>>, vector<1x16x8xf32>
    %29 = vector.shape_cast %28 : vector<1x16x8xf32> to vector<16x8xf32>
    %30 = vector.shape_cast %27 : vector<16x8xf32> to vector<1x16x8xf32>
    tpu.vector_store %arg5[%c2, %c0_15, %c0_16], %30 {strides = array<i32>} : memref<4x16x8xf32, #tpu.memory_space<vmem>>, vector<1x16x8xf32>,
    %31 = vector.extract_strided_slice %18 {offsets = [0, 24], sizes = [16, 8], strides = [1, 1]} : vector<16x64xf32> to vector<16x8xf32>
    %c3 = arith.constant 3 : index
    %c0_17 = arith.constant 0 : index
    %c0_18 = arith.constant 0 : index
    %32 = vector.load %arg5[%c3, %c0_17, %c0_18] : memref<4x16x8xf32, #tpu.memory_space<vmem>>, vector<1x16x8xf32>
    %33 = vector.shape_cast %32 : vector<1x16x8xf32> to vector<16x8xf32>
    %34 = vector.shape_cast %31 : vector<16x8xf32> to vector<1x16x8xf32>
    tpu.vector_store %arg5[%c3, %c0_17, %c0_18], %34 {strides = array<i32>} : memref<4x16x8xf32, #tpu.memory_space<vmem>>, vector<1x16x8xf32>,
    %35 = vector.extract_strided_slice %18 {offsets = [0, 32], sizes = [16, 16], strides = [1, 1]} : vector<16x64xf32> to vector<16x16xf32>
    %c0_19 = arith.constant 0 : index
    %c0_20 = arith.constant 0 : index
    %36 = vector.load %arg6[%c0_19, %c0_20] : memref<16x16xf32, #tpu.memory_space<vmem>>, vector<16x16xf32>
    tpu.vector_store %arg6[%c0_19, %c0_20], %35 {strides = array<i32>} : memref<16x16xf32, #tpu.memory_space<vmem>>, vector<16x16xf32>,
    %37 = vector.extract_strided_slice %18 {offsets = [0, 48], sizes = [16, 16], strides = [1, 1]} : vector<16x64xf32> to vector<16x16xf32>
    %c0_21 = arith.constant 0 : index
    %c0_22 = arith.constant 0 : index
    %38 = vector.load %arg7[%c0_21, %c0_22] : memref<16x16xf32, #tpu.memory_space<vmem>>, vector<16x16xf32>
    tpu.vector_store %arg7[%c0_21, %c0_22], %37 {strides = array<i32>} : memref<16x16xf32, #tpu.memory_space<vmem>>, vector<16x16xf32>,
    return
  }
  func.func @transform_0(%arg0: i32) -> (i32, i32) {
    %c0_i32 = arith.constant 0 : i32
    %c0_i32_0 = arith.constant 0 : i32
    return %arg0, %c0_i32 : i32, i32
  }
  func.func @transform_1(%arg0: i32) -> (i32, i32) {
    %c0_i32 = arith.constant 0 : i32
    %c0_i32_0 = arith.constant 0 : i32
    %c0_i32_1 = arith.constant 0 : i32
    return %c0_i32, %c0_i32_0 : i32, i32
  }
  func.func @transform_2(%arg0: i32) -> (i32, i32) {
    %c0_i32 = arith.constant 0 : i32
    %c0_i32_0 = arith.constant 0 : i32
    %c0_i32_1 = arith.constant 0 : i32
    return %c0_i32, %c0_i32_0 : i32, i32
  }
  func.func @transform_3(%arg0: i32) -> (i32, i32) {
    %c0_i32 = arith.constant 0 : i32
    %c0_i32_0 = arith.constant 0 : i32
    %c0_i32_1 = arith.constant 0 : i32
    return %c0_i32, %c0_i32_0 : i32, i32
  }
  func.func @transform_4(%arg0: i32) -> (i32, i32, i32) {
    %c0_i32 = arith.constant 0 : i32
    %c0_i32_0 = arith.constant 0 : i32
    %c0_i32_1 = arith.constant 0 : i32
    return %c0_i32, %arg0, %c0_i32_0 : i32, i32, i32
  }
  func.func @transform_5(%arg0: i32) -> (i32, i32) {
    %c0_i32 = arith.constant 0 : i32
    %c0_i32_0 = arith.constant 0 : i32
    return %arg0, %c0_i32 : i32, i32
  }
  func.func @transform_6(%arg0: i32) -> (i32, i32) {
    %c0_i32 = arith.constant 0 : i32
    %c0_i32_0 = arith.constant 0 : i32
    return %arg0, %c0_i32 : i32, i32
  }
}

</mosaic_0001>

<llo_original>
// kernel: tpu_custom_call.1
$region0: #{tpu_custom_call.1}
  #allocation0 [shape = 'u32[]', space=smem, size = 0x4, offset = 0x4, fixed_abs, tag = 'smem constant byte address 0x4 - core index']
  #allocation1 [shape = 'u32[144,128]{1,0:T(1,128)}', space=vmem, size = 0x12000, scoped, tag = 'internal scratch']
  %s0 = inlined_call_operand.hbm [shape: f32[16,32], index: 0, kind: input, shape index: {}]
  %s1 = inlined_call_operand.vmem [shape: f32[1,32], index: 1, kind: input, shape index: {}]
  %s2 = inlined_call_operand.hbm [shape: f32[32,64], index: 2, kind: input, shape index: {}]
  %s3 = inlined_call_operand.vmem [shape: f32[1,64], index: 3, kind: input, shape index: {}]
  %s4 = inlined_call_operand.vmem [shape: f32[4,16,8], index: 4, kind: output, shape index: {0}]
  %s5 = inlined_call_operand.hbm [shape: f32[16,16], index: 5, kind: output, shape index: {1}]
  %s6 = inlined_call_operand.hbm [shape: f32[16,16], index: 6, kind: output, shape index: {2}]
  %7 = xla_tuple %s4, %s5, %s6
  %s8 = sld [smem:[#allocation0]]
  $region50: #{tpu_custom_call.1} parent=0
    _
  %s10 = ssub.s32 1, %s8
  %s11 = scalar_select 0, %s10, %s8
  $region1: #{tpu_custom_call.1} parent=0
    #allocation2 [shape = 'u8[8192]{0}', space=vmem, size = 0x2000, scoped, tag = 'input window, operand 0, single buffered']
    #allocation3 [shape = 's32[1]{0}', space=sflag, size = 0x4, scoped, tag = 'scoped memory for tpu_custom_call.1']
    #allocation4 [shape = 's32[1]{0}', space=sflag, size = 0x4, scoped, tag = 'scoped memory for tpu_custom_call.1']
    #allocation5 [shape = 'u8[16384]{0}', space=vmem, size = 0x4000, scoped, tag = 'input window, operand 2, single buffered']
    #allocation6 [shape = 's32[1]{0}', space=sflag, size = 0x4, scoped, tag = 'scoped memory for tpu_custom_call.1']
    #allocation7 [shape = 'u8[8192]{0}', space=vmem, size = 0x2000, scoped, tag = 'output window, operand 1, single buffered']
    #allocation8 [shape = 'u8[8192]{0}', space=vmem, size = 0x2000, scoped, tag = 'output window, operand 2, single buffered']
    #allocation9 [shape = 's32[1]{0}', space=sflag, size = 0x4, scoped, tag = 'scoped memory for tpu_custom_call.1']
    %12 = vsyncpa [#allocation3], 0
    %13 = vsyncpa [#allocation6], 0
    %14 = vsyncpa [#allocation4], 0
    %15 = vsyncpa [#allocation9], 0
    // Predicated region
    $region2: #{tpu_custom_call.1} parent=1 // pred_check
      _
    $region3: #{tpu_custom_call.1} parent=1 // pred_check_branch
      %17 = sbr.rel (0) target = $region5
    $region4: #{tpu_custom_call.1} parent=1 // pred_region
      %s19 = ssub.s32 256, 256
      %20 = vsyncadd [#allocation3], %s19
      %s21 = sshll.u32 [#allocation2], 4
      %s22 = int_to_ptr.vmem [resolvable:$true] %s21
      %27 = dma.hbm_to_vmem [thread:$0]  %s0, 256, %s22, [#allocation3], 128, 128, 8
    $region5: #{tpu_custom_call.1} parent=1 // pred_fallthru
      _
    // Predicated region
    $region6: #{tpu_custom_call.1} parent=1 // pred_check
      _
    $region7: #{tpu_custom_call.1} parent=1 // pred_check_branch
      %29 = sbr.rel (0) target = $region9
    $region8: #{tpu_custom_call.1} parent=1 // pred_region
      _
    $region9: #{tpu_custom_call.1} parent=1 // pred_fallthru
      _
    // Predicated region
    $region10: #{tpu_custom_call.1} parent=1 // pred_check
      _
    $region11: #{tpu_custom_call.1} parent=1 // pred_check_branch
      %31 = sbr.rel (0) target = $region13
    $region12: #{tpu_custom_call.1} parent=1 // pred_region
      %s33 = ssub.s32 512, 512
      %34 = vsyncadd [#allocation6], %s33
      %s35 = sshll.u32 [#allocation5], 4
      %s36 = int_to_ptr.vmem [resolvable:$true] %s35
      %41 = dma.hbm_to_vmem [thread:$0]  %s2, 512, %s36, [#allocation6], 128, 128, 8
    $region13: #{tpu_custom_call.1} parent=1 // pred_fallthru
      _
    // Predicated region
    $region14: #{tpu_custom_call.1} parent=1 // pred_check
      _
    $region15: #{tpu_custom_call.1} parent=1 // pred_check_branch
      %43 = sbr.rel (0) target = $region17
    $region16: #{tpu_custom_call.1} parent=1 // pred_region
      _
    $region17: #{tpu_custom_call.1} parent=1 // pred_fallthru
      _
    // Predicated region
    $region18: #{tpu_custom_call.1} parent=1 // pred_check
      _
    $region19: #{tpu_custom_call.1} parent=1 // pred_check_branch
      %45 = sbr.rel (0) target = $region21
    $region20: #{tpu_custom_call.1} parent=1 // pred_region
      %46 = dma.done [#allocation3], 256
    $region21: #{tpu_custom_call.1} parent=1 // pred_fallthru
      _
    // Predicated region
    $region22: #{tpu_custom_call.1} parent=1 // pred_check
      _
    $region23: #{tpu_custom_call.1} parent=1 // pred_check_branch
      %48 = sbr.rel (0) target = $region25
    $region24: #{tpu_custom_call.1} parent=1 // pred_region
      %49 = dma.done [#allocation6], 512
    $region25: #{tpu_custom_call.1} parent=1 // pred_fallthru
      _
    %v50 = vld [vmem:[#allocation2] sm:$0xff]
    %v51 = vld [vmem:[#allocation2 + $0x8] sm:$0xff]
    %v52 = vmul.f32 %v50, %v50
    %v53 = vmul.f32 %v51, %v51
    %vm54 = vcmask 261120
    %v55 = vsel %vm54, %v52, 0.0
    %56 = vadd.xlane.f32.xlu0 %v55
    %v57 = vpop.xlane.xlu0 %56
    %v58 = vsel %vm54, %v53, 0.0
    %59 = vadd.xlane.f32.xlu0 %v58
    %v60 = vpop.xlane.xlu0 %59
    %v61 = vrcp.pop 32.0
    %v62 = vmul.f32 %v57, %v61
    %v63 = vmul.f32 %v60, %v61
    %v64 = vadd.f32 %v62, 1e-06
    %v65 = vadd.f32 %v63, 1e-06
    %v66 = vrsqrt.pop %v64
    %v67 = vrsqrt.pop %v65
    %v68 = vmul.f32 %v50, %v66
    %v69 = vmul.f32 %v51, %v67
    %v70 = vld [vmem:[%s1] sm:$0x1]
    %v72 = vlaneseq
    %v73 = vshrl.u32 %v72, 7
    %v74 = vsub.s32 0, %v73
    %v75 = vrot.slane %v70, %v74
    %v77 = vmul.f32 %v68, %v75
    %v78 = vmul.f32 %v69, %v75
    %v79 = vld [vmem:[#allocation5] sm:$0xff]
    %v80 = vld [vmem:[#allocation5 + $0x8] sm:$0xff]
    %v81 = vld [vmem:[#allocation5 + $0x10] sm:$0xff]
    %v82 = vld [vmem:[#allocation5 + $0x18] sm:$0xff]
    %v83 = vld [vmem:[%s3] sm:$0x1]
    %v85 = vlaneseq
    %v86 = vshrl.u32 %v85, 7
    %v87 = vsub.s32 0, %v86
    %v88 = vrot.slane %v83, %v87
    %v91 = vsel %vm54, %v77, 0
    %v94 = vsel %vm54, %v78, 0
    %96 = vmatprep.subr.mxu0 0.0
    %97 = vmatpush1.msra.mxu0 %v79
    %98 = vmatprep.subr.mxu0 0.0
    %99 = vmatpush1.msra.mxu0 %v80
    %100 = vmatprep.subr.mxu0 0.0
    %101 = vmatpush1.msra.mxu0 %v81
    %102 = vmatprep.subr.mxu0 0.0
    %103 = vmatpush1.msra.mxu0 %v82
    %104 = vmatprep.subr.mxu0 0.0
    %105 = vmatpush1.msra.mxu0 0.0
    %106 = vmatprep.subr.mxu0 0.0
    %107 = vmatpush1.msra.mxu0 0.0
    %108 = vmatprep.subr.mxu0 0.0
    %109 = vmatpush1.msra.mxu0 0.0
    %110 = vmatprep.subr.mxu0 0.0
    %111 = vmatpush1.msra.mxu0 0.0
    %112 = vmatprep.subr.mxu0 0.0
    %113 = vmatpush1.msra.mxu0 0.0
    %114 = vmatprep.subr.mxu0 0.0
    %115 = vmatpush1.msra.mxu0 0.0
    %116 = vmatprep.subr.mxu0 0.0
    %117 = vmatpush1.msra.mxu0 0.0
    %118 = vmatprep.subr.mxu0 0.0
    %119 = vmatpush1.msra.mxu0 0.0
    %120 = vmatprep.subr.mxu0 0.0
    %121 = vmatpush1.msra.mxu0 0.0
    %122 = vmatprep.subr.mxu0 0.0
    %123 = vmatpush1.msra.mxu0 0.0
    %124 = vmatprep.subr.mxu0 0.0
    %125 = vmatpush1.msra.mxu0 0.0
    %126 = vmatprep.subr.mxu0 0.0
    %127 = vmatpush1.msra.mxu0 0.0
    %128 = vmatprep.subr.mxu0 0.0
    %129 = vmatpush1.msra.mxu0 0.0
    %130 = vmatprep.subr.mxu0 0.0
    %131 = vmatpush1.msra.mxu0 0.0
    %132 = vmatprep.subr.mxu0 0.0
    %133 = vmatpush1.msra.mxu0 0.0
    %134 = vmatprep.subr.mxu0 0.0
    %135 = vmatpush1.msra.mxu0 0.0
    %136 = vmatprep.subr.mxu0 0.0
    %137 = vmatpush1.msra.mxu0 0.0
    %138 = vmatprep.subr.mxu0 0.0
    %139 = vmatpush1.msra.mxu0 0.0
    %140 = vmatprep.subr.mxu0 0.0
    %141 = vmatpush1.msra.mxu0 0.0
    %142 = vmatprep.subr.mxu0 0.0
    %143 = vmatpush1.msra.mxu0 0.0
    %144 = vmatprep.subr.mxu0 0.0
    %145 = vmatpush1.msra.mxu0 0.0
    %146 = vmatprep.subr.mxu0 0.0
    %147 = vmatpush1.msra.mxu0 0.0
    %148 = vmatprep.subr.mxu0 0.0
    %149 = vmatpush1.msra.mxu0 0.0
    %150 = vmatprep.subr.mxu0 0.0
    %151 = vmatpush1.msra.mxu0 0.0
    %152 = vmatprep.subr.mxu0 0.0
    %153 = vmatpush1.msra.mxu0 0.0
    %154 = vmatprep.subr.mxu0 0.0
    %155 = vmatpush1.msra.mxu0 0.0
    %156 = vmatprep.subr.mxu0 0.0
    %157 = vmatpush1.msra.mxu0 0.0
    %158 = vmatprep.subr.mxu0 0.0
    %159 = vmatpush1.msra.mxu0 0.0
    %160 = vmatprep.mubr.f32.mxu0 0.0
    %161 = vmatmul.mubr.f32.gmra.mrb[0].mxu0 %v91
    %v162 = vpop.f32.mrb[0].mxu0
    %v163 = vadd.f32 %v88, %v162
    %v164 = vpop.f32.mrb[0].mxu0
    %165 = vmatprep.mubr.f32.mxu0 0.0
    %166 = vmatmul.mubr.f32.gmra.mrb[0].mxu0 %v94
    %v167 = vpop.f32.mrb[0].mxu0
    %v168 = vadd.f32 %v88, %v167
    %v169 = vpop.f32.mrb[0].mxu0
    %170 = vdwg.mxu0
    %vm171 = vcmask 64512
    %172 = vst.msk [vmem:[%s4] sm:$0xff] %vm171, %v163
    %173 = vst.msk [vmem:[%s4 + $0x8] sm:$0xff] %vm171, %v168
    %176 = vrot.lane.b32.xlu0 %v163, 120
    %v177 = vpop.permute.xlu0 %176
    %178 = vrot.lane.b32.xlu0 %v168, 120
    %v179 = vpop.permute.xlu0 %178
    %s182 = scalar_lea.vmem %s4, 16
    %183 = vst.msk [vmem:[%s182] sm:$0xff] %vm171, %v177
    %184 = vst.msk [vmem:[%s182 + $0x8] sm:$0xff] %vm171, %v179
    %185 = vrot.lane.b32.xlu0 %v163, 112
    %v186 = vpop.permute.xlu0 %185
    %187 = vrot.lane.b32.xlu0 %v168, 112
    %v188 = vpop.permute.xlu0 %187
    %s191 = scalar_lea.vmem %s4, 32
    %192 = vst.msk [vmem:[%s191] sm:$0xff] %vm171, %v186
    %193 = vst.msk [vmem:[%s191 + $0x8] sm:$0xff] %vm171, %v188
    %194 = vrot.lane.b32.xlu0 %v163, 104
    %v195 = vpop.permute.xlu0 %194
    %196 = vrot.lane.b32.xlu0 %v168, 104
    %v197 = vpop.permute.xlu0 %196
    %s200 = scalar_lea.vmem %s4, 48
    %201 = vst.msk [vmem:[%s200] sm:$0xff] %vm171, %v195
    %202 = vst.msk [vmem:[%s200 + $0x8] sm:$0xff] %vm171, %v197
    %203 = vrot.lane.b32.xlu0 %v163, 96
    %v204 = vpop.permute.xlu0 %203
    %205 = vrot.lane.b32.xlu0 %v168, 96
    %v206 = vpop.permute.xlu0 %205
    %vm209 = vcmask 130048
    %210 = vst.msk [vmem:[#allocation7] sm:$0xff] %vm209, %v204
    %211 = vst.msk [vmem:[#allocation7 + $0x8] sm:$0xff] %vm209, %v206
    %212 = vrot.lane.b32.xlu0 %v163, 80
    %v213 = vpop.permute.xlu0 %212
    %214 = vrot.lane.b32.xlu0 %v168, 80
    %v215 = vpop.permute.xlu0 %214
    %218 = vst.msk [vmem:[#allocation8] sm:$0xff] %vm209, %v213
    %219 = vst.msk [vmem:[#allocation8 + $0x8] sm:$0xff] %vm209, %v215
    // Predicated region
    $region26: #{tpu_custom_call.1} parent=1 // pred_check
      _
    $region27: #{tpu_custom_call.1} parent=1 // pred_check_branch
      %221 = sbr.rel (0) target = $region29
    $region28: #{tpu_custom_call.1} parent=1 // pred_region
      _
    $region29: #{tpu_custom_call.1} parent=1 // pred_fallthru
      _
    // Predicated region
    $region30: #{tpu_custom_call.1} parent=1 // pred_check
      _
    $region31: #{tpu_custom_call.1} parent=1 // pred_check_branch
      %223 = sbr.rel (0) target = $region33
    $region32: #{tpu_custom_call.1} parent=1 // pred_region
      %s225 = ssub.s32 256, 256
      %226 = vsyncadd [#allocation4], %s225
      %s227 = sshll.u32 [#allocation7], 4
      %s228 = int_to_ptr.vmem [resolvable:$true] %s227
      %233 = dma.vmem_to_hbm [thread:$0]  %s228, 256, %s5, [#allocation4], 128, 128, 8
    $region33: #{tpu_custom_call.1} parent=1 // pred_fallthru
      _
    // Predicated region
    $region34: #{tpu_custom_call.1} parent=1 // pred_check
      _
    $region35: #{tpu_custom_call.1} parent=1 // pred_check_branch
      %235 = sbr.rel (0) target = $region37
    $region36: #{tpu_custom_call.1} parent=1 // pred_region
      %s237 = ssub.s32 256, 256
      %238 = vsyncadd [#allocation9], %s237
      %s239 = sshll.u32 [#allocation8], 4
      %s240 = int_to_ptr.vmem [resolvable:$true] %s239
      %245 = dma.vmem_to_hbm [thread:$0]  %s240, 256, %s6, [#allocation9], 128, 128, 8
    $region37: #{tpu_custom_call.1} parent=1 // pred_fallthru
      _
    // Predicated region
    $region38: #{tpu_custom_call.1} parent=1 // pred_check
      _
    $region39: #{tpu_custom_call.1} parent=1 // pred_check_branch
      %247 = sbr.rel (0) target = $region41
    $region40: #{tpu_custom_call.1} parent=1 // pred_region
      _
    $region41: #{tpu_custom_call.1} parent=1 // pred_fallthru
      _
    // Predicated region
    $region42: #{tpu_custom_call.1} parent=1 // pred_check
      _
    $region43: #{tpu_custom_call.1} parent=1 // pred_check_branch
      %249 = sbr.rel (0) target = $region45
    $region44: #{tpu_custom_call.1} parent=1 // pred_region
      %250 = dma.done [#allocation4], 256
    $region45: #{tpu_custom_call.1} parent=1 // pred_fallthru
      _
    // Predicated region
    $region46: #{tpu_custom_call.1} parent=1 // pred_check
      _
    $region47: #{tpu_custom_call.1} parent=1 // pred_check_branch
      %252 = sbr.rel (0) target = $region49
    $region48: #{tpu_custom_call.1} parent=1 // pred_region
      %253 = dma.done [#allocation9], 256
    $region49: #{tpu_custom_call.1} parent=1 // pred_fallthru
      _
    %254 = vsyncpa [#allocation3], 1
    %255 = vsyncpa [#allocation6], 1
    %256 = vsyncpa [#allocation4], 1
    %257 = vsyncpa [#allocation9], 1

// kernel: tpu_custom_call.1
$region0: #{tpu_custom_call.1}
  #allocation0 [shape = 'u32[]', space=smem, size = 0x4, offset = 0x4, fixed_abs, tag = 'smem constant byte address 0x4 - core index']
  #allocation1 [shape = 'u32[144,128]{1,0:T(1,128)}', space=vmem, size = 0x12000, scoped, tag = 'internal scratch']
  %s0 = inlined_call_operand.hbm [shape: f32[16,32], index: 0, kind: input, shape index: {}]
  %s1 = inlined_call_operand.vmem [shape: f32[1,32], index: 1, kind: input, shape index: {}]
  %s2 = inlined_call_operand.hbm [shape: f32[32,64], index: 2, kind: input, shape index: {}]
  %s3 = inlined_call_operand.vmem [shape: f32[1,64], index: 3, kind: input, shape index: {}]
  %s4 = inlined_call_operand.vmem [shape: f32[4,16,8], index: 4, kind: output, shape index: {0}]
  %s5 = inlined_call_operand.hbm [shape: f32[16,16], index: 5, kind: output, shape index: {1}]
  %s6 = inlined_call_operand.hbm [shape: f32[16,16], index: 6, kind: output, shape index: {2}]
  %7 = xla_tuple %s4, %s5, %s6
  %s8 = sld [smem:[#allocation0]]
  $region50: #{tpu_custom_call.1} parent=0
    _
  %s10 = ssub.s32 1, %s8
  %s11 = scalar_select 0, %s10, %s8
  $region1: #{tpu_custom_call.1} parent=0
    #allocation2 [shape = 'u8[8192]{0}', space=vmem, size = 0x2000, scoped, tag = 'input window, operand 0, single buffered']
    #allocation3 [shape = 's32[1]{0}', space=sflag, size = 0x4, scoped, tag = 'scoped memory for tpu_custom_call.1']
    #allocation4 [shape = 's32[1]{0}', space=sflag, size = 0x4, scoped, tag = 'scoped memory for tpu_custom_call.1']
    #allocation5 [shape = 'u8[16384]{0}', space=vmem, size = 0x4000, scoped, tag = 'input window, operand 2, single buffered']
    #allocation6 [shape = 's32[1]{0}', space=sflag, size = 0x4, scoped, tag = 'scoped memory for tpu_custom_call.1']
    #allocation7 [shape = 'u8[8192]{0}', space=vmem, size = 0x2000, scoped, tag = 'output window, operand 1, single buffered']
    #allocation8 [shape = 'u8[8192]{0}', space=vmem, size = 0x2000, scoped, tag = 'output window, operand 2, single buffered']
    #allocation9 [shape = 's32[1]{0}', space=sflag, size = 0x4, scoped, tag = 'scoped memory for tpu_custom_call.1']
    %12 = vsyncpa [#allocation3], 0
    %13 = vsyncpa [#allocation6], 0
    %14 = vsyncpa [#allocation4], 0
    %15 = vsyncpa [#allocation9], 0
    // Predicated region
    $region2: #{tpu_custom_call.1} parent=1 // pred_check
      _
    $region3: #{tpu_custom_call.1} parent=1 // pred_check_branch
      %17 = sbr.rel (0) target = $region5
    $region4: #{tpu_custom_call.1} parent=1 // pred_region
      %s19 = ssub.s32 256, 256
      %20 = vsyncadd [#allocation3], %s19
      %s21 = sshll.u32 [#allocation2], 4
      %s22 = int_to_ptr.vmem [resolvable:$true] %s21
      %27 = dma.hbm_to_vmem [thread:$0]  %s0, 256, %s22, [#allocation3], 128, 128, 8
    $region5: #{tpu_custom_call.1} parent=1 // pred_fallthru
      _
    // Predicated region
    $region6: #{tpu_custom_call.1} parent=1 // pred_check
      _
    $region7: #{tpu_custom_call.1} parent=1 // pred_check_branch
      %29 = sbr.rel (0) target = $region9
    $region8: #{tpu_custom_call.1} parent=1 // pred_region
      _
    $region9: #{tpu_custom_call.1} parent=1 // pred_fallthru
      _
    // Predicated region
    $region10: #{tpu_custom_call.1} parent=1 // pred_check
      _
    $region11: #{tpu_custom_call.1} parent=1 // pred_check_branch
      %31 = sbr.rel (0) target = $region13
    $region12: #{tpu_custom_call.1} parent=1 // pred_region
      %s33 = ssub.s32 512, 512
      %34 = vsyncadd [#allocation6], %s33
      %s35 = sshll.u32 [#allocation5], 4
      %s36 = int_to_ptr.vmem [resolvable:$true] %s35
      %41 = dma.hbm_to_vmem [thread:$0]  %s2, 512, %s36, [#allocation6], 128, 128, 8
    $region13: #{tpu_custom_call.1} parent=1 // pred_fallthru
      _
    // Predicated region
    $region14: #{tpu_custom_call.1} parent=1 // pred_check
      _
    $region15: #{tpu_custom_call.1} parent=1 // pred_check_branch
      %43 = sbr.rel (0) target = $region17
    $region16: #{tpu_custom_call.1} parent=1 // pred_region
      _
    $region17: #{tpu_custom_call.1} parent=1 // pred_fallthru
      _
    // Predicated region
    $region18: #{tpu_custom_call.1} parent=1 // pred_check
      _
    $region19: #{tpu_custom_call.1} parent=1 // pred_check_branch
      %45 = sbr.rel (0) target = $region21
    $region20: #{tpu_custom_call.1} parent=1 // pred_region
      %46 = dma.done [#allocation3], 256
    $region21: #{tpu_custom_call.1} parent=1 // pred_fallthru
      _
    // Predicated region
    $region22: #{tpu_custom_call.1} parent=1 // pred_check
      _
    $region23: #{tpu_custom_call.1} parent=1 // pred_check_branch
      %48 = sbr.rel (0) target = $region25
    $region24: #{tpu_custom_call.1} parent=1 // pred_region
      %49 = dma.done [#allocation6], 512
    $region25: #{tpu_custom_call.1} parent=1 // pred_fallthru
      _
    %v50 = vld [vmem:[#allocation2] sm:$0xff]
    %v51 = vld [vmem:[#allocation2 + $0x8] sm:$0xff]
    %v52 = vmul.f32 %v50, %v50
    %v53 = vmul.f32 %v51, %v51
    %vm54 = vcmask 261120
    %v55 = vsel %vm54, %v52, 0.0
    %56 = vadd.xlane.f32.xlu0 %v55
    %v57 = vpop.xlane.xlu0 %56
    %v58 = vsel %vm54, %v53, 0.0
    %59 = vadd.xlane.f32.xlu0 %v58
    %v60 = vpop.xlane.xlu0 %59
    %v61 = vrcp.pop 32.0
    %v62 = vmul.f32 %v57, %v61
    %v63 = vmul.f32 %v60, %v61
    %v64 = vadd.f32 %v62, 1e-06
    %v65 = vadd.f32 %v63, 1e-06
    %v66 = vrsqrt.pop %v64
    %v67 = vrsqrt.pop %v65
    %v68 = vmul.f32 %v50, %v66
    %v69 = vmul.f32 %v51, %v67
    %v70 = vld [vmem:[%s1] sm:$0x1]
    %v72 = vlaneseq
    %v73 = vshrl.u32 %v72, 7
    %v74 = vsub.s32 0, %v73
    %v75 = vrot.slane %v70, %v74
    %v77 = vmul.f32 %v68, %v75
    %v78 = vmul.f32 %v69, %v75
    %v79 = vld [vmem:[#allocation5] sm:$0xff]
    %v80 = vld [vmem:[#allocation5 + $0x8] sm:$0xff]
    %v81 = vld [vmem:[#allocation5 + $0x10] sm:$0xff]
    %v82 = vld [vmem:[#allocation5 + $0x18] sm:$0xff]
    %v83 = vld [vmem:[%s3] sm:$0x1]
    %v85 = vlaneseq
    %v86 = vshrl.u32 %v85, 7
    %v87 = vsub.s32 0, %v86
    %v88 = vrot.slane %v83, %v87
    %v91 = vsel %vm54, %v77, 0
    %v94 = vsel %vm54, %v78, 0
    %96 = vmatprep.subr.mxu0 0.0
    %97 = vmatpush1.msra.mxu0 %v79
    %98 = vmatprep.subr.mxu0 0.0
    %99 = vmatpush1.msra.mxu0 %v80
    %100 = vmatprep.subr.mxu0 0.0
    %101 = vmatpush1.msra.mxu0 %v81
    %102 = vmatprep.subr.mxu0 0.0
    %103 = vmatpush1.msra.mxu0 %v82
    %104 = vmatprep.subr.mxu0 0.0
    %105 = vmatpush1.msra.mxu0 0.0
    %106 = vmatprep.subr.mxu0 0.0
    %107 = vmatpush1.msra.mxu0 0.0
    %108 = vmatprep.subr.mxu0 0.0
    %109 = vmatpush1.msra.mxu0 0.0
    %110 = vmatprep.subr.mxu0 0.0
    %111 = vmatpush1.msra.mxu0 0.0
    %112 = vmatprep.subr.mxu0 0.0
    %113 = vmatpush1.msra.mxu0 0.0
    %114 = vmatprep.subr.mxu0 0.0
    %115 = vmatpush1.msra.mxu0 0.0
    %116 = vmatprep.subr.mxu0 0.0
    %117 = vmatpush1.msra.mxu0 0.0
    %118 = vmatprep.subr.mxu0 0.0
    %119 = vmatpush1.msra.mxu0 0.0
    %120 = vmatprep.subr.mxu0 0.0
    %121 = vmatpush1.msra.mxu0 0.0
    %122 = vmatprep.subr.mxu0 0.0
    %123 = vmatpush1.msra.mxu0 0.0
    %124 = vmatprep.subr.mxu0 0.0
    %125 = vmatpush1.msra.mxu0 0.0
    %126 = vmatprep.subr.mxu0 0.0
    %127 = vmatpush1.msra.mxu0 0.0
    %128 = vmatprep.subr.mxu0 0.0
    %129 = vmatpush1.msra.mxu0 0.0
    %130 = vmatprep.subr.mxu0 0.0
    %131 = vmatpush1.msra.mxu0 0.0
    %132 = vmatprep.subr.mxu0 0.0
    %133 = vmatpush1.msra.mxu0 0.0
    %134 = vmatprep.subr.mxu0 0.0
    %135 = vmatpush1.msra.mxu0 0.0
    %136 = vmatprep.subr.mxu0 0.0
    %137 = vmatpush1.msra.mxu0 0.0
    %138 = vmatprep.subr.mxu0 0.0
    %139 = vmatpush1.msra.mxu0 0.0
    %140 = vmatprep.subr.mxu0 0.0
    %141 = vmatpush1.msra.mxu0 0.0
    %142 = vmatprep.subr.mxu0 0.0
    %143 = vmatpush1.msra.mxu0 0.0
    %144 = vmatprep.subr.mxu0 0.0
    %145 = vmatpush1.msra.mxu0 0.0
    %146 = vmatprep.subr.mxu0 0.0
    %147 = vmatpush1.msra.mxu0 0.0
    %148 = vmatprep.subr.mxu0 0.0
    %149 = vmatpush1.msra.mxu0 0.0
    %150 = vmatprep.subr.mxu0 0.0
    %151 = vmatpush1.msra.mxu0 0.0
    %152 = vmatprep.subr.mxu0 0.0
    %153 = vmatpush1.msra.mxu0 0.0
    %154 = vmatprep.subr.mxu0 0.0
    %155 = vmatpush1.msra.mxu0 0.0
    %156 = vmatprep.subr.mxu0 0.0
    %157 = vmatpush1.msra.mxu0 0.0
    %158 = vmatprep.subr.mxu0 0.0
    %159 = vmatpush1.msra.mxu0 0.0
    %160 = vmatprep.mubr.f32.mxu0 0.0
    %161 = vmatmul.mubr.f32.gmra.mrb[0].mxu0 %v91
    %v162 = vpop.f32.mrb[0].mxu0
    %v163 = vadd.f32 %v88, %v162
    %v164 = vpop.f32.mrb[0].mxu0
    %165 = vmatprep.mubr.f32.mxu0 0.0
    %166 = vmatmul.mubr.f32.gmra.mrb[0].mxu0 %v94
    %v167 = vpop.f32.mrb[0].mxu0
    %v168 = vadd.f32 %v88, %v167
    %v169 = vpop.f32.mrb[0].mxu0
    %170 = vdwg.mxu0
    %vm171 = vcmask 64512
    %172 = vst.msk [vmem:[%s4] sm:$0xff] %vm171, %v163
    %173 = vst.msk [vmem:[%s4 + $0x8] sm:$0xff] %vm171, %v168
    %176 = vrot.lane.b32.xlu0 %v163, 120
    %v177 = vpop.permute.xlu0 %176
    %178 = vrot.lane.b32.xlu0 %v168, 120
    %v179 = vpop.permute.xlu0 %178
    %s182 = scalar_lea.vmem %s4, 16
    %183 = vst.msk [vmem:[%s182] sm:$0xff] %vm171, %v177
    %184 = vst.msk [vmem:[%s182 + $0x8] sm:$0xff] %vm171, %v179
    %185 = vrot.lane.b32.xlu0 %v163, 112
    %v186 = vpop.permute.xlu0 %185
    %187 = vrot.lane.b32.xlu0 %v168, 112
    %v188 = vpop.permute.xlu0 %187
    %s191 = scalar_lea.vmem %s4, 32
    %192 = vst.msk [vmem:[%s191] sm:$0xff] %vm171, %v186
    %193 = vst.msk [vmem:[%s191 + $0x8] sm:$0xff] %vm171, %v188
    %194 = vrot.lane.b32.xlu0 %v163, 104
    %v195 = vpop.permute.xlu0 %194
    %196 = vrot.lane.b32.xlu0 %v168, 104
    %v197 = vpop.permute.xlu0 %196
    %s200 = scalar_lea.vmem %s4, 48
    %201 = vst.msk [vmem:[%s200] sm:$0xff] %vm171, %v195
    %202 = vst.msk [vmem:[%s200 + $0x8] sm:$0xff] %vm171, %v197
    %203 = vrot.lane.b32.xlu0 %v163, 96
    %v204 = vpop.permute.xlu0 %203
    %205 = vrot.lane.b32.xlu0 %v168, 96
    %v206 = vpop.permute.xlu0 %205
    %vm209 = vcmask 130048
    %210 = vst.msk [vmem:[#allocation7] sm:$0xff] %vm209, %v204
    %211 = vst.msk [vmem:[#allocation7 + $0x8] sm:$0xff] %vm209, %v206
    %212 = vrot.lane.b32.xlu0 %v163, 80
    %v213 = vpop.permute.xlu0 %212
    %214 = vrot.lane.b32.xlu0 %v168, 80
    %v215 = vpop.permute.xlu0 %214
    %218 = vst.msk [vmem:[#allocation8] sm:$0xff] %vm209, %v213
    %219 = vst.msk [vmem:[#allocation8 + $0x8] sm:$0xff] %vm209, %v215
    // Predicated region
    $region26: #{tpu_custom_call.1} parent=1 // pred_check
      _
    $region27: #{tpu_custom_call.1} parent=1 // pred_check_branch
      %221 = sbr.rel (0) target = $region29
    $region28: #{tpu_custom_call.1} parent=1 // pred_region
      _
    $region29: #{tpu_custom_call.1} parent=1 // pred_fallthru
      _
    // Predicated region
    $region30: #{tpu_custom_call.1} parent=1 // pred_check
      _
    $region31: #{tpu_custom_call.1} parent=1 // pred_check_branch
      %223 = sbr.rel (0) target = $region33
    $region32: #{tpu_custom_call.1} parent=1 // pred_region
      %s225 = ssub.s32 256, 256
      %226 = vsyncadd [#allocation4], %s225
      %s227 = sshll.u32 [#allocation7], 4
      %s228 = int_to_ptr.vmem [resolvable:$true] %s227
      %233 = dma.vmem_to_hbm [thread:$0]  %s228, 256, %s5, [#allocation4], 128, 128, 8
    $region33: #{tpu_custom_call.1} parent=1 // pred_fallthru
      _
    // Predicated region
    $region34: #{tpu_custom_call.1} parent=1 // pred_check
      _
    $region35: #{tpu_custom_call.1} parent=1 // pred_check_branch
      %235 = sbr.rel (0) target = $region37
    $region36: #{tpu_custom_call.1} parent=1 // pred_region
      %s237 = ssub.s32 256, 256
      %238 = vsyncadd [#allocation9], %s237
      %s239 = sshll.u32 [#allocation8], 4
      %s240 = int_to_ptr.vmem [resolvable:$true] %s239
      %245 = dma.vmem_to_hbm [thread:$0]  %s240, 256, %s6, [#allocation9], 128, 128, 8
    $region37: #{tpu_custom_call.1} parent=1 // pred_fallthru
      _
    // Predicated region
    $region38: #{tpu_custom_call.1} parent=1 // pred_check
      _
    $region39: #{tpu_custom_call.1} parent=1 // pred_check_branch
      %247 = sbr.rel (0) target = $region41
    $region40: #{tpu_custom_call.1} parent=1 // pred_region
      _
    $region41: #{tpu_custom_call.1} parent=1 // pred_fallthru
      _
    // Predicated region
    $region42: #{tpu_custom_call.1} parent=1 // pred_check
      _
    $region43: #{tpu_custom_call.1} parent=1 // pred_check_branch
      %249 = sbr.rel (0) target = $region45
    $region44: #{tpu_custom_call.1} parent=1 // pred_region
      %250 = dma.done [#allocation4], 256
    $region45: #{tpu_custom_call.1} parent=1 // pred_fallthru
      _
    // Predicated region
    $region46: #{tpu_custom_call.1} parent=1 // pred_check
      _
    $region47: #{tpu_custom_call.1} parent=1 // pred_check_branch
      %252 = sbr.rel (0) target = $region49
    $region48: #{tpu_custom_call.1} parent=1 // pred_region
      %253 = dma.done [#allocation9], 256
    $region49: #{tpu_custom_call.1} parent=1 // pred_fallthru
      _
    %254 = vsyncpa [#allocation3], 1
    %255 = vsyncpa [#allocation6], 1
    %256 = vsyncpa [#allocation4], 1
    %257 = vsyncpa [#allocation9], 1

</llo_original>
